<compile_context>
chip_gen: v5e
topology: v5e:2x2
jax: 0.10.0
libtpu: 0.0.40
codegen_flags: <defaults>
</compile_context>

<pallas_src>
import functools
import math

import jax
import jax.numpy as jnp
from jax.experimental import pallas as pl
from jax.experimental.pallas import tpu as pltpu

LN_EPS = 1e-12


def feature_resizer_kernel(x_ref, w_ref, b_ref, g_ref, beta_ref, o_ref, *, c2_actual):
    # x_ref:    (TM, C1)    input row tile (native dtype, e.g. bf16 or f32)
    # w_ref:    (C1, C2p)   fc weight, transposed vs torch, lane-padded
    # b_ref:    (1,  C2p)   fc bias (zero in padded lanes)
    # g_ref:    (1,  C2p)   layer-norm gamma (zero in padded lanes)
    # beta_ref: (1,  C2p)   layer-norm beta  (zero in padded lanes)
    # o_ref:    (TM, C2p)   output tile
    # c2_actual: true (unpadded) output feature size -> LN statistics divisor.

    # Linear on the MXU: keep operands in their native dtype, accumulate in f32.
    y = jnp.dot(x_ref[...], w_ref[...], preferred_element_type=jnp.float32)
    y = y + b_ref[...].astype(jnp.float32)

    c2_pad = y.shape[-1]
    if c2_pad == c2_actual:
        # Lane-dense case: plain two-pass mean/variance in f32.
        mean = jnp.mean(y, axis=-1, keepdims=True)
        centered = y - mean
        var = jnp.mean(centered * centered, axis=-1, keepdims=True)
    else:
        # Padded weight columns and bias are zero, so y is exactly 0 in the
        # padded lanes: the raw sum already equals the sum over valid lanes.
        lane = jax.lax.broadcasted_iota(jnp.int32, (1, c2_pad), dimension=1)
        mask = lane < c2_actual
        inv_n = jnp.float32(1.0 / c2_actual)
        mean = jnp.sum(y, axis=-1, keepdims=True) * inv_n
        centered = jnp.where(mask, y - mean, 0.0)   # keep padded lanes out of var
        var = jnp.sum(centered * centered, axis=-1, keepdims=True) * inv_n

    y_norm = centered * jax.lax.rsqrt(var + LN_EPS)
    y_norm = y_norm * g_ref[...].astype(jnp.float32) + beta_ref[...].astype(jnp.float32)

    # Dropout (eval mode) == identity.
    o_ref[...] = y_norm.astype(o_ref.dtype)


def _round_up(x, m):
    return (x + m - 1) // m * m


def _vmem_cap_bytes():
    """3/4 of physical VMEM (leaves headroom for Mosaic internal scratch)."""
    try:
        cap = int(pltpu.get_tpu_info().vmem_capacity_bytes)
    except Exception:
        cap = 64 << 20  # conservative fallback (v7x per-TC VMEM)
    return (3 * cap) // 4


@functools.partial(jax.jit, static_argnames=("tile_m",))
def feature_resizer(x, w, b, gamma, beta, *, tile_m=512):
    """x: (B, S, C1); w: (C1, C2) (transposed torch weight); b, gamma, beta: (C2,).

    Returns (B, S, C2) = Dropout(LayerNorm(x @ w + b)) with eval-mode dropout.
    """
    B, S, C1 = x.shape
    C1w, C2 = w.shape
    assert C1w == C1, "weight must be (C1, C2)"
    M = B * S

    # --- Lane-dense output: pad C2 up to a multiple of 128 lanes. -------------
    C2p = _round_up(C2, 128)
    if C2p != C2:
        w = jnp.pad(w, ((0, 0), (0, C2p - C2)))
        b = jnp.pad(b, (0, C2p - C2))
        gamma = jnp.pad(gamma, (0, C2p - C2))
        beta = jnp.pad(beta, (0, C2p - C2))

    # --- Row tiling: no HBM-side M padding; Pallas handles the ragged tail. ---
    x_itemsize = jnp.dtype(x.dtype).itemsize
    w_itemsize = jnp.dtype(w.dtype).itemsize
    p_itemsize = jnp.dtype(b.dtype).itemsize
    row_mult = max(8, 32 // x_itemsize)      # sublane packing: 8 f32 / 16 bf16 / 32 i8
    if M <= tile_m:
        if M >= 512:
            # Keep >= 2 grid steps so both v7x TensorCores get work
            # (negligible extra cost on single-TC v5e/v6e).
            tm = _round_up(pl.cdiv(M, 2), row_mult)
        else:
            tm = M                            # full extent is always a legal block
    else:
        tm = _round_up(min(tile_m, M), row_mult)
    grid_m = pl.cdiv(M, tm)

    x2d = x.reshape(M, C1)
    b2d = b.reshape(1, C2p)
    g2d = gamma.reshape(1, C2p)
    beta2d = beta.reshape(1, C2p)

    # --- VMEM budget: double-buffered x/out tiles + single-buffered params. ---
    vmem_need = 2 * tm * C1 * x_itemsize          # pipelined x tiles
    vmem_need += 2 * tm * C2p * x_itemsize        # pipelined out tiles
    vmem_need += C1 * C2p * w_itemsize            # resident weight (Buffered(1))
    vmem_need += 3 * C2p * p_itemsize             # bias / gamma / beta
    vmem_limit = min(max(32 << 20, int(vmem_need * 1.25) + (2 << 20)),
                     _vmem_cap_bytes())

    cost = pl.CostEstimate(
        flops=2 * M * C1 * C2p,
        transcendentals=M,                         # one rsqrt per row
        bytes_accessed=(M * C1 * x_itemsize
                        + C1 * C2p * w_itemsize
                        + 3 * C2p * p_itemsize
                        + M * C2p * x_itemsize),
    )

    kernel = functools.partial(feature_resizer_kernel, c2_actual=C2)

    out2d = pl.pallas_call(
        kernel,
        out_shape=jax.ShapeDtypeStruct((M, C2p), x.dtype),
        grid_spec=pltpu.PrefetchScalarGridSpec(
            num_scalar_prefetch=0,
            grid=(grid_m,),
            in_specs=[
                pl.BlockSpec((tm, C1), lambda i: (i, 0)),            # x row tile
                pl.BlockSpec((C1, C2p), lambda i: (0, 0),            # weight (resident)
                             pipeline_mode=pl.Buffered(1)),
                pl.BlockSpec((1, C2p), lambda i: (0, 0),              # bias
                             pipeline_mode=pl.Buffered(1)),
                pl.BlockSpec((1, C2p), lambda i: (0, 0),              # ln gamma
                             pipeline_mode=pl.Buffered(1)),
                pl.BlockSpec((1, C2p), lambda i: (0, 0),              # ln beta
                             pipeline_mode=pl.Buffered(1)),
            ],
            out_specs=pl.BlockSpec((tm, C2p), lambda i: (i, 0)),
        ),
        compiler_params=pltpu.CompilerParams(
            dimension_semantics=("parallel",),   # megacore sharding on v7x
            vmem_limit_bytes=vmem_limit,
        ),
        cost_estimate=cost,
    )(x2d, w, b2d, g2d, beta2d)

    if C2p != C2:
        out2d = out2d[:, :C2]     # only copy when lanes had to be padded
    return out2d.reshape(B, S, C2)


def _reference(x, w, b, gamma, beta):
    """Pure-JAX f32 reference: Linear -> LayerNorm(eps=1e-12) -> identity dropout."""
    y = jnp.einsum(
        "bsc,cd->bsd", x.astype(jnp.float32), w.astype(jnp.float32)
    ) + b.astype(jnp.float32)
    mu = jnp.mean(y, axis=-1, keepdims=True)
    var = jnp.mean((y - mu) ** 2, axis=-1, keepdims=True)
    y = (y - mu) / jnp.sqrt(var + LN_EPS)
    return y * gamma.astype(jnp.float32) + beta.astype(jnp.float32)


if __name__ == "__main__":
    master_key = jax.random.PRNGKey(0)

    def run_case(key, B, S, C1, C2, dtype, tile_m, atol):
        kx, kw, kb, kg, kbeta = jax.random.split(key, 5)
        x = jax.random.normal(kx, (B, S, C1), dtype=jnp.float32).astype(dtype)
        # fc.weight is (C2, C1) in torch -> store transposed (C1, C2) for the kernel.
        w = (jax.random.normal(kw, (C1, C2), dtype=jnp.float32)
             * (1.0 / math.sqrt(C1))).astype(dtype)
        b = (0.01 * jax.random.normal(kb, (C2,), dtype=jnp.float32)).astype(dtype)
        gamma = (1.0 + 0.1 * jax.random.normal(kg, (C2,), dtype=jnp.float32)).astype(dtype)
        beta = (0.1 * jax.random.normal(kbeta, (C2,), dtype=jnp.float32)).astype(dtype)

        out = feature_resizer(x, w, b, gamma, beta, tile_m=tile_m)
        out = jax.block_until_ready(out)

        ref = _reference(x, w, b, gamma, beta)
        assert out.shape == (B, S, C2), out.shape
        err = float(jnp.max(jnp.abs(out.astype(jnp.float32) - ref)))
        assert err < atol, (str(dtype), err)

    k1, k2, k3, k4, k5 = jax.random.split(master_key, 5)

    # 1) f32, lane-dense output (C2 multiple of 128); M smaller than tile_m.
    run_case(k1, B=2, S=8, C1=256, C2=128, dtype=jnp.float32, tile_m=512, atol=1e-4)
    # 2) narrow C2 (padded to 128 lanes inside the wrapper) + small ragged M.
    run_case(k2, B=2, S=7, C1=96, C2=64, dtype=jnp.float32, tile_m=512, atol=1e-4)
    # 3) bf16 inputs/params: bf16 MXU operands, f32 accumulation + f32 LN stats.
    run_case(k3, B=2, S=64, C1=256, C2=128, dtype=jnp.bfloat16, tile_m=512, atol=6e-2)
    # 4) multi-step grid with a ragged (partial) last row block + padded C2.
    run_case(k4, B=3, S=70, C1=96, C2=64, dtype=jnp.float32, tile_m=128, atol=1e-4)
    # 5) M == 512 exactly: tile is split so the grid has 2 steps (v7x 2-TC path).
    run_case(k5, B=8, S=64, C1=128, C2=256, dtype=jnp.float32, tile_m=512, atol=1e-4)

    print("KERNEL_OK")
</pallas_src>

<mosaic_0001>
module attributes {stable_mosaic.version = 11 : i64} {
  func.func @feature_resizer_kernel(%arg0: i32, %arg1: memref<16x256xf32, #tpu.memory_space<vmem>>, %arg2: memref<256x128xf32, #tpu.memory_space<vmem>>, %arg3: memref<1x128xf32, #tpu.memory_space<vmem>>, %arg4: memref<1x128xf32, #tpu.memory_space<vmem>>, %arg5: memref<1x128xf32, #tpu.memory_space<vmem>>, %arg6: memref<16x128xf32, #tpu.memory_space<vmem>>) attributes {dimension_semantics = [#tpu.dimension_semantics<parallel>], iteration_bounds = array<i64: 1>, scalar_prefetch = 0 : i64, scratch_operands = 0 : i64, tpu.core_type = #tpu.core_type<tc>, window_params = [{transform_indices = @transform_0, window_bounds = array<i64: 16, 256>}, {pipeline_mode = #tpu.pipeline_mode<synchronous>, transform_indices = @transform_1, window_bounds = array<i64: 256, 128>}, {pipeline_mode = #tpu.pipeline_mode<synchronous>, transform_indices = @transform_2, window_bounds = array<i64: 1, 128>}, {pipeline_mode = #tpu.pipeline_mode<synchronous>, transform_indices = @transform_3, window_bounds = array<i64: 1, 128>}, {pipeline_mode = #tpu.pipeline_mode<synchronous>, transform_indices = @transform_4, window_bounds = array<i64: 1, 128>}, {transform_indices = @transform_5, window_bounds = array<i64: 16, 128>}]} {
    %c0 = arith.constant 0 : index
    %c0_0 = arith.constant 0 : index
    %0 = vector.load %arg1[%c0, %c0_0] : memref<16x256xf32, #tpu.memory_space<vmem>>, vector<16x256xf32>
    %c0_1 = arith.constant 0 : index
    %c0_2 = arith.constant 0 : index
    %1 = vector.load %arg2[%c0_1, %c0_2] : memref<256x128xf32, #tpu.memory_space<vmem>>, vector<256x128xf32>
    %cst = arith.constant dense<0.000000e+00> : vector<16x128xf32>
    %2 = tpu.matmul %0, %1, %cst {dimension_numbers = #tpu.dot_dimension_numbers<[1], [0], [0], [1], [0, 0, 1, 1], [], []>} : vector<16x256xf32>, vector<256x128xf32>, vector<16x128xf32> -> vector<16x128xf32>
    %c0_3 = arith.constant 0 : index
    %c0_4 = arith.constant 0 : index
    %3 = vector.load %arg3[%c0_3, %c0_4] : memref<1x128xf32, #tpu.memory_space<vmem>>, vector<1x128xf32>
    %4 = vector.broadcast %3 : vector<1x128xf32> to vector<16x128xf32>
    %5 = arith.addf %2, %4 : vector<16x128xf32>
    %cst_5 = arith.constant dense<0.000000e+00> : vector<16xf32>
    %6 = vector.multi_reduction <add>, %5, %cst_5 [1] : vector<16x128xf32> to vector<16xf32>
    %7 = vector.shape_cast %6 : vector<16xf32> to vector<16x1xf32>
    %cst_6 = arith.constant 1.280000e+02 : f32
    %8 = vector.broadcast %cst_6 : f32 to vector<16x1xf32>
    %9 = arith.divf %7, %8 : vector<16x1xf32>
    %10 = vector.broadcast %9 : vector<16x1xf32> to vector<16x128xf32>
    %11 = arith.subf %5, %10 : vector<16x128xf32>
    %12 = arith.mulf %11, %11 : vector<16x128xf32>
    %cst_7 = arith.constant dense<0.000000e+00> : vector<16xf32>
    %13 = vector.multi_reduction <add>, %12, %cst_7 [1] : vector<16x128xf32> to vector<16xf32>
    %14 = vector.shape_cast %13 : vector<16xf32> to vector<16x1xf32>
    %cst_8 = arith.constant 1.280000e+02 : f32
    %15 = vector.broadcast %cst_8 : f32 to vector<16x1xf32>
    %16 = arith.divf %14, %15 : vector<16x1xf32>
    %cst_9 = arith.constant 9.99999996E-13 : f32
    %17 = vector.broadcast %cst_9 : f32 to vector<16x1xf32>
    %18 = arith.addf %16, %17 : vector<16x1xf32>
    %19 = math.rsqrt %18 : vector<16x1xf32>
    %20 = vector.broadcast %19 : vector<16x1xf32> to vector<16x128xf32>
    %21 = arith.mulf %11, %20 : vector<16x128xf32>
    %c0_10 = arith.constant 0 : index
    %c0_11 = arith.constant 0 : index
    %22 = vector.load %arg4[%c0_10, %c0_11] : memref<1x128xf32, #tpu.memory_space<vmem>>, vector<1x128xf32>
    %23 = vector.broadcast %22 : vector<1x128xf32> to vector<16x128xf32>
    %24 = arith.mulf %21, %23 : vector<16x128xf32>
    %c0_12 = arith.constant 0 : index
    %c0_13 = arith.constant 0 : index
    %25 = vector.load %arg5[%c0_12, %c0_13] : memref<1x128xf32, #tpu.memory_space<vmem>>, vector<1x128xf32>
    %26 = vector.broadcast %25 : vector<1x128xf32> to vector<16x128xf32>
    %27 = arith.addf %24, %26 : vector<16x128xf32>
    %c0_14 = arith.constant 0 : index
    %c0_15 = arith.constant 0 : index
    %28 = vector.load %arg6[%c0_14, %c0_15] : memref<16x128xf32, #tpu.memory_space<vmem>>, vector<16x128xf32>
    tpu.vector_store %arg6[%c0_14, %c0_15], %27 {strides = array<i32>} : memref<16x128xf32, #tpu.memory_space<vmem>>, vector<16x128xf32>,
    return
  }
  func.func @transform_0(%arg0: i32) -> (i32, i32) {
    %c0_i32 = arith.constant 0 : i32
    %c0_i32_0 = arith.constant 0 : i32
    return %arg0, %c0_i32 : i32, i32
  }
  func.func @transform_1(%arg0: i32) -> (i32, i32) {
    %c0_i32 = arith.constant 0 : i32
    %c0_i32_0 = arith.constant 0 : i32
    %c0_i32_1 = arith.constant 0 : i32
    return %c0_i32, %c0_i32_0 : i32, i32
  }
  func.func @transform_2(%arg0: i32) -> (i32, i32) {
    %c0_i32 = arith.constant 0 : i32
    %c0_i32_0 = arith.constant 0 : i32
    %c0_i32_1 = arith.constant 0 : i32
    return %c0_i32, %c0_i32_0 : i32, i32
  }
  func.func @transform_3(%arg0: i32) -> (i32, i32) {
    %c0_i32 = arith.constant 0 : i32
    %c0_i32_0 = arith.constant 0 : i32
    %c0_i32_1 = arith.constant 0 : i32
    return %c0_i32, %c0_i32_0 : i32, i32
  }
  func.func @transform_4(%arg0: i32) -> (i32, i32) {
    %c0_i32 = arith.constant 0 : i32
    %c0_i32_0 = arith.constant 0 : i32
    %c0_i32_1 = arith.constant 0 : i32
    return %c0_i32, %c0_i32_0 : i32, i32
  }
  func.func @transform_5(%arg0: i32) -> (i32, i32) {
    %c0_i32 = arith.constant 0 : i32
    %c0_i32_0 = arith.constant 0 : i32
    return %arg0, %c0_i32 : i32, i32
  }
}

</mosaic_0001>

<llo_original>
// kernel: feature_resizer.1
$region0: #{feature_resizer.1}
  #allocation0 [shape = 'u32[]', space=smem, size = 0x4, offset = 0x4, fixed_abs, tag = 'smem constant byte address 0x4 - core index']
  #allocation1 [shape = 'u32[72,128]{1,0:T(1,128)}', space=vmem, size = 0x9000, scoped, tag = 'internal scratch']
  %s0 = inlined_call_operand.hbm [shape: f32[16,256], index: 0, kind: input, shape index: {}]
  %s1 = inlined_call_operand.hbm [shape: f32[256,128], index: 1, kind: input, shape index: {}]
  %s2 = inlined_call_operand.vmem [shape: f32[1,128], index: 2, kind: input, shape index: {}]
  %s3 = inlined_call_operand.vmem [shape: f32[1,128], index: 3, kind: input, shape index: {}]
  %s4 = inlined_call_operand.vmem [shape: f32[1,128], index: 4, kind: input, shape index: {}]
  %s5 = inlined_call_operand.hbm [shape: f32[16,128], index: 5, kind: output, shape index: {}]
  %s6 = sld [smem:[#allocation0]]
  $region38: #{feature_resizer.1} parent=0
    _
  %s8 = ssub.s32 1, %s6
  %s9 = scalar_select 0, %s8, %s6
  $region1: #{feature_resizer.1} parent=0
    #allocation2 [shape = 'u8[16384]{0}', space=vmem, size = 0x4000, scoped, tag = 'input window, operand 0, single buffered']
    #allocation3 [shape = 's32[1]{0}', space=sflag, size = 0x4, scoped, tag = 'scoped memory for feature_resizer.1']
    #allocation4 [shape = 's32[1]{0}', space=sflag, size = 0x4, scoped, tag = 'scoped memory for feature_resizer.1']
    #allocation5 [shape = 'u8[131072]{0}', space=vmem, size = 0x20000, scoped, tag = 'input window, operand 1, single buffered']
    #allocation6 [shape = 's32[1]{0}', space=sflag, size = 0x4, scoped, tag = 'scoped memory for feature_resizer.1']
    #allocation7 [shape = 'u8[8192]{0}', space=vmem, size = 0x2000, scoped, tag = 'output window, operand 0, single buffered']
    %10 = vsyncpa [#allocation3], 0
    %11 = vsyncpa [#allocation6], 0
    %12 = vsyncpa [#allocation4], 0
    // Predicated region
    $region2: #{feature_resizer.1} parent=1 // pred_check
      _
    $region3: #{feature_resizer.1} parent=1 // pred_check_branch
      %14 = sbr.rel (0) target = $region5
    $region4: #{feature_resizer.1} parent=1 // pred_region
      %16 = vsyncadd [#allocation3], 0
      %s17 = sshll.u32 %s0, 4
      %s18 = int_to_ptr.hbm [resolvable:$true] %s17
      %s19 = sshll.u32 [#allocation2], 4
      %s20 = int_to_ptr.vmem [resolvable:$true] %s19
      %25 = dma.hbm_to_vmem [thread:$0]  %s18, 512, %s20, [#allocation3], 256, 256, 16
    $region5: #{feature_resizer.1} parent=1 // pred_fallthru
      _
    // Predicated region
    $region6: #{feature_resizer.1} parent=1 // pred_check
      _
    $region7: #{feature_resizer.1} parent=1 // pred_check_branch
      %27 = sbr.rel (0) target = $region9
    $region8: #{feature_resizer.1} parent=1 // pred_region
      %29 = vsyncadd [#allocation6], 0
      %s30 = sshll.u32 %s1, 4
      %s31 = int_to_ptr.hbm [resolvable:$true] %s30
      %s32 = sshll.u32 [#allocation5], 4
      %s33 = int_to_ptr.vmem [resolvable:$true] %s32
      %38 = dma.hbm_to_vmem [thread:$0]  %s31, 4096, %s33, [#allocation6], 128, 128, 8
    $region9: #{feature_resizer.1} parent=1 // pred_fallthru
      _
    // Predicated region
    $region10: #{feature_resizer.1} parent=1 // pred_check
      _
    $region11: #{feature_resizer.1} parent=1 // pred_check_branch
      %40 = sbr.rel (0) target = $region13
    $region12: #{feature_resizer.1} parent=1 // pred_region
      _
    $region13: #{feature_resizer.1} parent=1 // pred_fallthru
      _
    // Predicated region
    $region14: #{feature_resizer.1} parent=1 // pred_check
      _
    $region15: #{feature_resizer.1} parent=1 // pred_check_branch
      %42 = sbr.rel (0) target = $region17
    $region16: #{feature_resizer.1} parent=1 // pred_region
      _
    $region17: #{feature_resizer.1} parent=1 // pred_fallthru
      _
    // Predicated region
    $region18: #{feature_resizer.1} parent=1 // pred_check
      _
    $region19: #{feature_resizer.1} parent=1 // pred_check_branch
      %44 = sbr.rel (0) target = $region21
    $region20: #{feature_resizer.1} parent=1 // pred_region
      _
    $region21: #{feature_resizer.1} parent=1 // pred_fallthru
      _
    // Predicated region
    $region22: #{feature_resizer.1} parent=1 // pred_check
      _
    $region23: #{feature_resizer.1} parent=1 // pred_check_branch
      %46 = sbr.rel (0) target = $region25
    $region24: #{feature_resizer.1} parent=1 // pred_region
      %48 = dma.done [#allocation3], 512
    $region25: #{feature_resizer.1} parent=1 // pred_fallthru
      _
    // Predicated region
    $region26: #{feature_resizer.1} parent=1 // pred_check
      _
    $region27: #{feature_resizer.1} parent=1 // pred_check_branch
      %50 = sbr.rel (0) target = $region29
    $region28: #{feature_resizer.1} parent=1 // pred_region
      %52 = dma.done [#allocation6], 4096
    $region29: #{feature_resizer.1} parent=1 // pred_fallthru
      _
    %v53 = vld [vmem:[#allocation2] sm:$0xff]
    %v54 = vld [vmem:[#allocation2 + $0x8] sm:$0xff]
    %v55 = vld [vmem:[#allocation2 + $0x10] sm:$0xff]
    %v56 = vld [vmem:[#allocation2 + $0x18] sm:$0xff]
    %v57 = vld [vmem:[#allocation5] sm:$0xff]
    %v58 = vld [vmem:[#allocation5 + $0x8] sm:$0xff]
    %v59 = vld [vmem:[#allocation5 + $0x10] sm:$0xff]
    %v60 = vld [vmem:[#allocation5 + $0x18] sm:$0xff]
    %v61 = vld [vmem:[#allocation5 + $0x20] sm:$0xff]
    %v62 = vld [vmem:[#allocation5 + $0x28] sm:$0xff]
    %v63 = vld [vmem:[#allocation5 + $0x30] sm:$0xff]
    %v64 = vld [vmem:[#allocation5 + $0x38] sm:$0xff]
    %v65 = vld [vmem:[#allocation5 + $0x40] sm:$0xff]
    %v66 = vld [vmem:[#allocation5 + $0x48] sm:$0xff]
    %v67 = vld [vmem:[#allocation5 + $0x50] sm:$0xff]
    %v68 = vld [vmem:[#allocation5 + $0x58] sm:$0xff]
    %v69 = vld [vmem:[#allocation5 + $0x60] sm:$0xff]
    %v70 = vld [vmem:[#allocation5 + $0x68] sm:$0xff]
    %v71 = vld [vmem:[#allocation5 + $0x70] sm:$0xff]
    %v72 = vld [vmem:[#allocation5 + $0x78] sm:$0xff]
    %v73 = vld [vmem:[#allocation5 + $0x80] sm:$0xff]
    %v74 = vld [vmem:[#allocation5 + $0x88] sm:$0xff]
    %v75 = vld [vmem:[#allocation5 + $0x90] sm:$0xff]
    %v76 = vld [vmem:[#allocation5 + $0x98] sm:$0xff]
    %v77 = vld [vmem:[#allocation5 + $0xa0] sm:$0xff]
    %v78 = vld [vmem:[#allocation5 + $0xa8] sm:$0xff]
    %v79 = vld [vmem:[#allocation5 + $0xb0] sm:$0xff]
    %v80 = vld [vmem:[#allocation5 + $0xb8] sm:$0xff]
    %v81 = vld [vmem:[#allocation5 + $0xc0] sm:$0xff]
    %v82 = vld [vmem:[#allocation5 + $0xc8] sm:$0xff]
    %v83 = vld [vmem:[#allocation5 + $0xd0] sm:$0xff]
    %v84 = vld [vmem:[#allocation5 + $0xd8] sm:$0xff]
    %v85 = vld [vmem:[#allocation5 + $0xe0] sm:$0xff]
    %v86 = vld [vmem:[#allocation5 + $0xe8] sm:$0xff]
    %v87 = vld [vmem:[#allocation5 + $0xf0] sm:$0xff]
    %v88 = vld [vmem:[#allocation5 + $0xf8] sm:$0xff]
    %v89 = vld [vmem:[%s2] sm:$0x1]
    %v91 = vperm.slane %v89, 0
    %93 = vmatpush.msra.mxu0 %v72
    %94 = vmatpush.msra.mxu0 %v71
    %95 = vmatpush.msra.mxu0 %v70
    %96 = vmatpush.msra.mxu0 %v69
    %97 = vmatpush.msra.mxu0 %v68
    %98 = vmatpush.msra.mxu0 %v67
    %99 = vmatpush.msra.mxu0 %v66
    %100 = vmatpush.msra.mxu0 %v65
    %101 = vmatpush.msra.mxu0 %v64
    %102 = vmatpush.msra.mxu0 %v63
    %103 = vmatpush.msra.mxu0 %v62
    %104 = vmatpush.msra.mxu0 %v61
    %105 = vmatpush.msra.mxu0 %v60
    %106 = vmatpush.msra.mxu0 %v59
    %107 = vmatpush.msra.mxu0 %v58
    %108 = vmatpush.msra.mxu0 %v57
    %109 = vmatmul.f32.gmra.mxu0 %v53
    %v110 = vpop.f32.mrf.mxu0
    %v111 = vadd.f32 %v91, %v110
    %112 = vmatmul.f32.gmra.mxu0 %v55
    %v113 = vpop.f32.mrf.mxu0
    %v114 = vadd.f32 %v91, %v113
    %115 = vdwg.mxu0
    %116 = vmatpush.msra.mxu0 %v88
    %117 = vmatpush.msra.mxu0 %v87
    %118 = vmatpush.msra.mxu0 %v86
    %119 = vmatpush.msra.mxu0 %v85
    %120 = vmatpush.msra.mxu0 %v84
    %121 = vmatpush.msra.mxu0 %v83
    %122 = vmatpush.msra.mxu0 %v82
    %123 = vmatpush.msra.mxu0 %v81
    %124 = vmatpush.msra.mxu0 %v80
    %125 = vmatpush.msra.mxu0 %v79
    %126 = vmatpush.msra.mxu0 %v78
    %127 = vmatpush.msra.mxu0 %v77
    %128 = vmatpush.msra.mxu0 %v76
    %129 = vmatpush.msra.mxu0 %v75
    %130 = vmatpush.msra.mxu0 %v74
    %131 = vmatpush.msra.mxu0 %v73
    %132 = vmatmul.f32.gmra.mxu0 %v54
    %v133 = vpop.f32.mrf.mxu0
    %v134 = vadd.f32 %v111, %v133
    %135 = vmatmul.f32.gmra.mxu0 %v56
    %v136 = vpop.f32.mrf.mxu0
    %v137 = vadd.f32 %v114, %v136
    %138 = vdwg.mxu0
    %139 = vadd.xlane.f32.xlu0 %v134
    %v140 = vpop.xlane.xlu0 %139
    %141 = vadd.xlane.f32.xlu0 %v137
    %v142 = vpop.xlane.xlu0 %141
    %v143 = vrcp.pop 128.0
    %v144 = vmul.f32 128.0, %v143
    %v145 = vsub.f32 1.0, %v144
    %v146 = vmul.f32 %v143, %v145
    %v147 = vadd.f32 %v143, %v146
    %vm148 = vweird.f32 %v143
    %v149 = vsel %vm148, %v143, %v147
    %v150 = vmul.f32 %v140, %v149
    %v151 = vmul.f32 %v142, %v149
    %v152 = vsub.f32 %v134, %v150
    %v153 = vsub.f32 %v137, %v151
    %v154 = vmul.f32 %v152, %v152
    %v155 = vmul.f32 %v153, %v153
    %156 = vadd.xlane.f32.xlu0 %v154
    %v157 = vpop.xlane.xlu0 %156
    %158 = vadd.xlane.f32.xlu0 %v155
    %v159 = vpop.xlane.xlu0 %158
    %v160 = vmul.f32 %v157, %v149
    %v161 = vmul.f32 %v159, %v149
    %v162 = vadd.f32 %v160, 1e-12
    %v163 = vadd.f32 %v161, 1e-12
    %v164 = vrsqrt.pop %v162
    %v165 = vmul.f32 %v164, %v162
    %v166 = vmul.f32 %v165, %v164
    %v167 = vmul.f32 0.5, %v166
    %v168 = vsub.f32 1.5, %v167
    %v169 = vmul.f32 %v164, %v168
    %vm170 = vweird.f32 %v162
    %vm171 = vweird.f32 %v164
    %vm172 = vmor %vm170, %vm171
    %v173 = vsel %vm172, %v164, %v169
    %v174 = vrsqrt.pop %v163
    %v175 = vmul.f32 %v174, %v163
    %v176 = vmul.f32 %v175, %v174
    %v177 = vmul.f32 0.5, %v176
    %v178 = vsub.f32 1.5, %v177
    %v179 = vmul.f32 %v174, %v178
    %vm180 = vweird.f32 %v163
    %vm181 = vweird.f32 %v174
    %vm182 = vmor %vm180, %vm181
    %v183 = vsel %vm182, %v174, %v179
    %v184 = vmul.f32 %v152, %v173
    %v185 = vmul.f32 %v153, %v183
    %v186 = vld [vmem:[%s3] sm:$0x1]
    %v188 = vperm.slane %v186, 0
    %v190 = vmul.f32 %v184, %v188
    %v191 = vmul.f32 %v185, %v188
    %v192 = vld [vmem:[%s4] sm:$0x1]
    %v194 = vperm.slane %v192, 0
    %v196 = vadd.f32 %v190, %v194
    %v197 = vadd.f32 %v191, %v194
    %198 = vst [vmem:[#allocation7] sm:$0xff] %v196
    %199 = vst [vmem:[#allocation7 + $0x8] sm:$0xff] %v197
    // Predicated region
    $region30: #{feature_resizer.1} parent=1 // pred_check
      _
    $region31: #{feature_resizer.1} parent=1 // pred_check_branch
      %201 = sbr.rel (0) target = $region33
    $region32: #{feature_resizer.1} parent=1 // pred_region
      %203 = vsyncadd [#allocation4], 0
      %s204 = sshll.u32 [#allocation7], 4
      %s205 = int_to_ptr.vmem [resolvable:$true] %s204
      %s206 = sshll.u32 %s5, 4
      %s207 = int_to_ptr.hbm [resolvable:$true] %s206
      %212 = dma.vmem_to_hbm [thread:$0]  %s205, 256, %s207, [#allocation4], 128, 128, 8
    $region33: #{feature_resizer.1} parent=1 // pred_fallthru
      _
    // Predicated region
    $region34: #{feature_resizer.1} parent=1 // pred_check
      _
    $region35: #{feature_resizer.1} parent=1 // pred_check_branch
      %214 = sbr.rel (0) target = $region37
    $region36: #{feature_resizer.1} parent=1 // pred_region
      %216 = dma.done [#allocation4], 256
    $region37: #{feature_resizer.1} parent=1 // pred_fallthru
      _
    %217 = vsyncpa [#allocation3], 1
    %218 = vsyncpa [#allocation6], 1
    %219 = vsyncpa [#allocation4], 1

</llo_original>
